<compile_context>
chip_gen: v7x
topology: tpu7x:2x2x1
jax: 0.10.0
libtpu: 0.0.40
codegen_flags: <defaults>
</compile_context>

<pallas_src>
import jax
import jax.numpy as jnp
from jax import lax
from jax.experimental import pallas as pl
from jax.experimental.pallas import tpu as pltpu


# ----------------------------------------------------------------------------
# Pallas kernel: reflect-padded 3x3 conv + bias + ReLU for one
# (Cout tile, sample, row band) grid step.
# ----------------------------------------------------------------------------
def _conv3x3_bias_relu_kernel(x_ref, halo_ref, w_ref, b_ref, o_ref):
    # x_ref:    (TH, W, Cin)   row band of the activation (native dtype)
    # halo_ref: (2,  W, Cin)   row above / below the band (reflected at edges)
    # w_ref:    (9*Cin, TCO)   HWIO weights reshaped for one im2col matmul
    # b_ref:    (1, TCO)
    # o_ref:    (TH, W, TCO)
    th, wd, cin = x_ref.shape
    tco = o_ref.shape[-1]

    # In-kernel reflect pad: +1 row above/below (halo rows), +1 col left/right.
    xb = jnp.concatenate([halo_ref[0:1], x_ref[...], halo_ref[1:2]], axis=0)
    xb = jnp.concatenate([xb[:, 1:2], xb, xb[:, wd - 2:wd - 1]], axis=1)

    # im2col: one (TH*W, 9*Cin) operand -> a single MXU matmul with K = 9*Cin
    # instead of 9 tiny K=Cin matmuls.  Operands stay in their native dtype.
    taps = [lax.slice(xb, (dy, dx, 0), (dy + th, dx + wd, cin))
            for dy in range(3) for dx in range(3)]
    patches = jnp.concatenate(taps, axis=-1).reshape(th * wd, 9 * cin)

    acc = jnp.dot(patches, w_ref[...], preferred_element_type=jnp.float32)
    acc = jnp.maximum(acc + b_ref[...], 0.0)           # fused bias + ReLU
    o_ref[...] = acc.reshape(th, wd, tco).astype(o_ref.dtype)


# ----------------------------------------------------------------------------
# Tiling / VMEM helpers
# ----------------------------------------------------------------------------
def _round_up(v, m):
    return ((v + m - 1) // m) * m


def _step_vmem_bytes(th, wd, cin, tco, in_item, out_item):
    """Per-grid-step footprint: double-buffered streams + kernel intermediates."""
    x_blk = th * wd * cin * in_item
    halo_blk = 2 * wd * cin * in_item
    w_blk = 9 * cin * tco * 4
    b_blk = tco * 4
    o_blk = th * wd * tco * out_item
    pipelined = 2 * (x_blk + halo_blk + w_blk + b_blk + o_blk)
    interm = ((th + 2) * wd * cin            # H-padded band
              + (th + 2) * (wd + 2) * cin    # fully padded band
              + th * wd * 9 * cin) * in_item  # im2col
    interm += th * wd * tco * 4 + o_blk       # f32 matmul result + cast copy
    return pipelined + interm


def _choose_band_rows(h, wd, cin, tco, in_item, out_item, budget=40 << 20):
    """Largest divisor of H that fits the VMEM budget, preferring >=2 bands
    (>=2 independent parallel grid units for v7x's two TensorCores)."""
    divisors = sorted((d for d in range(1, h + 1) if h % d == 0), reverse=True)
    fitting = [d for d in divisors
               if _step_vmem_bytes(d, wd, cin, tco, in_item, out_item) <= budget]
    if not fitting:
        # TODO(synk): manual-DMA banding for shapes where even 1 row overflows.
        return divisors[-1]
    multi = [d for d in fitting if h // d >= 2]
    return multi[0] if multi else fitting[0]


# ----------------------------------------------------------------------------
# Wrapper: one reflect-padded 3x3 conv + bias + ReLU (NHWC, Cout pre-padded)
# ----------------------------------------------------------------------------
def conv3x3_reflect_relu(x_nhwc, w2d, b2):
    n, h, wd, cin = x_nhwc.shape
    k9, cout_p = w2d.shape
    assert k9 == 9 * cin and cout_p % 128 == 0
    if h < 2 or wd < 2:
        raise ValueError("reflect padding of 1 needs H >= 2 and W >= 2")

    out_dtype = x_nhwc.dtype
    in_item = jnp.dtype(x_nhwc.dtype).itemsize
    out_item = jnp.dtype(out_dtype).itemsize

    # 256-wide Cout tiles fill the v6e/v7x 256x256 MXU; 128 otherwise.
    tco = 256 if cout_p % 256 == 0 else 128
    th = _choose_band_rows(h, wd, cin, tco, in_item, out_item)
    nb = h // th

    # Reflect halo rows per band (row above / below), built once per conv.
    r0 = jnp.arange(nb, dtype=jnp.int32) * th
    top_idx = jnp.where(r0 == 0, 1, r0 - 1)          # reflect at the top edge
    bot_idx = jnp.where(r0 + th >= h, h - 2, r0 + th)  # reflect at the bottom
    halo = jnp.stack([x_nhwc[:, top_idx], x_nhwc[:, bot_idx]], axis=2)
    # halo: (N, nb, 2, W, Cin)

    vmem_need = _step_vmem_bytes(th, wd, cin, tco, in_item, out_item)
    vmem_budget = int(min(max(vmem_need + (16 << 20), 32 << 20), 48 << 20))

    return pl.pallas_call(
        _conv3x3_bias_relu_kernel,
        out_shape=jax.ShapeDtypeStruct((n, h, wd, cout_p), out_dtype),
        grid_spec=pltpu.PrefetchScalarGridSpec(
            num_scalar_prefetch=0,
            # Cout tile outermost -> weight block index constant across the
            # inner (batch, band) axes, so Pallas skips its re-DMA.
            grid=(cout_p // tco, n, nb),
            in_specs=[
                pl.BlockSpec((None, th, wd, cin),
                             lambda co, ni, b: (ni, b, 0, 0)),
                pl.BlockSpec((None, None, 2, wd, cin),
                             lambda co, ni, b: (ni, b, 0, 0, 0)),
                pl.BlockSpec((k9, tco), lambda co, ni, b: (0, co)),
                pl.BlockSpec((1, tco), lambda co, ni, b: (0, co)),
            ],
            out_specs=pl.BlockSpec((None, th, wd, tco),
                                   lambda co, ni, b: (ni, b, 0, co)),
        ),
        compiler_params=pltpu.CompilerParams(
            dimension_semantics=("parallel", "parallel", "parallel"),
            vmem_limit_bytes=vmem_budget,
        ),
    )(x_nhwc, halo, w2d, b2)


# ----------------------------------------------------------------------------
# VggDecoderBlock: params + forward
# ----------------------------------------------------------------------------
def _conv_dims(in_channels, out_channels, layer):
    if layer in (1, 2):
        return [(in_channels * 2, in_channels), (in_channels, out_channels)]
    if layer == 3:
        return [(in_channels * 2, in_channels), (in_channels, in_channels),
                (in_channels, in_channels), (in_channels, out_channels)]
    return [(in_channels, out_channels)]


def init_vgg_decoder_block(key, in_channels, out_channels, layer):
    """Raw params (PyTorch layout): list of (weight (Cout, Cin, 3, 3), bias)."""
    params = []
    for cin, cout in _conv_dims(in_channels, out_channels, layer):
        key, kw, kb = jax.random.split(key, 3)
        wscale = 1.0 / jnp.sqrt(cin * 9.0)
        params.append((
            jax.random.normal(kw, (cout, cin, 3, 3), jnp.float32) * wscale,
            jax.random.normal(kb, (cout,), jnp.float32) * 0.1,
        ))
    return params


def prepare_vgg_decoder_params(raw_params):
    """One-time weight prep (hoisted out of the forward): OIHW->HWIO,
    reshape to (9*Cin, Cout_p), pad channels to multiples of 128 and thread
    that padding through the conv chain (zero weights/bias -> padded channels
    stay exactly 0 through ReLU)."""
    prepared = []
    cin_eff = raw_params[0][0].shape[1]        # true channels of the first input
    for w_oihw, b in raw_params:
        cout, cin = w_oihw.shape[0], w_oihw.shape[1]
        cout_p = _round_up(cout, 128)
        w_hwio = jnp.transpose(w_oihw, (2, 3, 1, 0))           # (3,3,cin,cout)
        w_hwio = jnp.pad(w_hwio, ((0, 0), (0, 0),
                                  (0, cin_eff - cin), (0, cout_p - cout)))
        prepared.append((
            w_hwio.reshape(9 * cin_eff, cout_p).astype(jnp.float32),
            jnp.pad(b, (0, cout_p - cout)).reshape(1, cout_p).astype(jnp.float32),
        ))
        cin_eff = cout_p
    return prepared


def _pad_features(x, target):
    """Zero-pad x (NCHW) on the bottom/right to match target's spatial size.
    TODO(synk): stand-in for utils.pad_fetures (source not provided)."""
    dh = target.shape[2] - x.shape[2]
    dw = target.shape[3] - x.shape[3]
    if dh > 0 or dw > 0:
        x = jnp.pad(x, ((0, 0), (0, 0), (0, max(dh, 0)), (0, max(dw, 0))))
    return x


def vgg_decoder_block_forward(prepared_params, out_channels, inp, con_channels):
    """inp / con_channels in NCHW (PyTorch convention). Returns NCHW."""
    x = inp
    if con_channels is not None:
        # nn.Upsample(scale_factor=2, mode='nearest')
        x = jnp.repeat(jnp.repeat(x, 2, axis=2), 2, axis=3)
        x = _pad_features(x, con_channels)
        x = jnp.concatenate([x, con_channels], axis=1)
    x = jnp.transpose(x, (0, 2, 3, 1))          # NCHW -> NHWC (channels on lanes)
    for w2d, b2 in prepared_params:
        x = conv3x3_reflect_relu(x, w2d, b2)
    x = x[..., :out_channels]                   # drop lane padding once, at the end
    return jnp.transpose(x, (0, 3, 1, 2))


# ----------------------------------------------------------------------------
# Pure-JAX reference (matches the PyTorch forward)
# ----------------------------------------------------------------------------
def _vgg_decoder_block_ref(raw_params, inp, con_channels):
    x = inp
    if con_channels is not None:
        x = jnp.repeat(jnp.repeat(x, 2, axis=2), 2, axis=3)
        x = _pad_features(x, con_channels)
        x = jnp.concatenate([x, con_channels], axis=1)
    for w, b in raw_params:
        xp = jnp.pad(x, ((0, 0), (0, 0), (1, 1), (1, 1)), mode="reflect")
        x = lax.conv_general_dilated(
            xp, w, window_strides=(1, 1), padding="VALID",
            dimension_numbers=("NCHW", "OIHW", "NCHW"))
        x = jnp.maximum(x + b.reshape(1, -1, 1, 1), 0.0)
    return x


if __name__ == "__main__":
    key = jax.random.PRNGKey(0)
    k_inp, k_con, k_p1, k_p3, k_p4 = jax.random.split(key, 5)

    in_channels, out_channels = 4, 4

    # layer=1: upsample 8x8 -> 16x16, concat skip (-> 8 ch), two convs.
    inp = jax.random.normal(k_inp, (2, in_channels, 8, 8), jnp.float32)
    con = jax.random.normal(k_con, (2, in_channels, 16, 16), jnp.float32)
    raw1 = init_vgg_decoder_block(k_p1, in_channels, out_channels, layer=1)
    prep1 = prepare_vgg_decoder_params(raw1)
    out1 = vgg_decoder_block_forward(prep1, out_channels, inp, con)
    jax.block_until_ready(out1)
    ref1 = _vgg_decoder_block_ref(raw1, inp, con)
    assert out1.shape == (2, out_channels, 16, 16)
    assert jnp.allclose(out1, ref1, atol=1e-4, rtol=1e-4), "layer=1 mismatch"

    # layer=3: four convs (exercises the padded-channel chain).
    raw3 = init_vgg_decoder_block(k_p3, in_channels, out_channels, layer=3)
    prep3 = prepare_vgg_decoder_params(raw3)
    out3 = vgg_decoder_block_forward(prep3, out_channels, inp, con)
    jax.block_until_ready(out3)
    ref3 = _vgg_decoder_block_ref(raw3, inp, con)
    assert out3.shape == (2, out_channels, 16, 16)
    assert jnp.allclose(out3, ref3, atol=1e-4, rtol=1e-4), "layer=3 mismatch"

    # default layer: single conv + ReLU, no skip connection.
    raw4 = init_vgg_decoder_block(k_p4, in_channels, out_channels, layer=4)
    prep4 = prepare_vgg_decoder_params(raw4)
    x4 = jax.random.normal(k_inp, (2, in_channels, 16, 16), jnp.float32)
    out4 = vgg_decoder_block_forward(prep4, out_channels, x4, None)
    jax.block_until_ready(out4)
    ref4 = _vgg_decoder_block_ref(raw4, x4, None)
    assert out4.shape == (2, out_channels, 16, 16)
    assert jnp.allclose(out4, ref4, atol=1e-4, rtol=1e-4), "default-layer mismatch"

    print("KERNEL_OK")
</pallas_src>

<mosaic_0001>
module attributes {stable_mosaic.version = 11 : i64} {
  func.func @_conv3x3_bias_relu_kernel(%arg0: i32, %arg1: i32, %arg2: i32, %arg3: memref<1x8x16x8xf32, #tpu.memory_space<vmem>>, %arg4: memref<1x1x2x16x8xf32, #tpu.memory_space<vmem>>, %arg5: memref<72x128xf32, #tpu.memory_space<vmem>>, %arg6: memref<1x128xf32, #tpu.memory_space<vmem>>, %arg7: memref<1x8x16x128xf32, #tpu.memory_space<vmem>>) attributes {dimension_semantics = [#tpu.dimension_semantics<parallel>, #tpu.dimension_semantics<parallel>, #tpu.dimension_semantics<parallel>], iteration_bounds = array<i64: 1, 2, 2>, scalar_prefetch = 0 : i64, scratch_operands = 0 : i64, tpu.core_type = #tpu.core_type<tc>, window_params = [{transform_indices = @transform_0, window_bounds = array<i64: 1, 8, 16, 8>}, {transform_indices = @transform_1, window_bounds = array<i64: 1, 1, 2, 16, 8>}, {transform_indices = @transform_2, window_bounds = array<i64: 72, 128>}, {transform_indices = @transform_3, window_bounds = array<i64: 1, 128>}, {transform_indices = @transform_4, window_bounds = array<i64: 1, 8, 16, 128>}]} {
    %c0 = arith.constant 0 : index
    %c0_0 = arith.constant 0 : index
    %c0_1 = arith.constant 0 : index
    %c0_2 = arith.constant 0 : index
    %c0_3 = arith.constant 0 : index
    %0 = vector.load %arg4[%c0, %c0_0, %c0_1, %c0_2, %c0_3] : memref<1x1x2x16x8xf32, #tpu.memory_space<vmem>>, vector<1x1x1x16x8xf32>
    %1 = vector.shape_cast %0 : vector<1x1x1x16x8xf32> to vector<1x16x8xf32>
    %c0_4 = arith.constant 0 : index
    %c0_5 = arith.constant 0 : index
    %c0_6 = arith.constant 0 : index
    %c0_7 = arith.constant 0 : index
    %2 = vector.load %arg3[%c0_4, %c0_5, %c0_6, %c0_7] : memref<1x8x16x8xf32, #tpu.memory_space<vmem>>, vector<1x8x16x8xf32>
    %3 = vector.shape_cast %2 : vector<1x8x16x8xf32> to vector<8x16x8xf32>
    %c0_8 = arith.constant 0 : index
    %c0_9 = arith.constant 0 : index
    %c1 = arith.constant 1 : index
    %c0_10 = arith.constant 0 : index
    %c0_11 = arith.constant 0 : index
    %4 = vector.load %arg4[%c0_8, %c0_9, %c1, %c0_10, %c0_11] : memref<1x1x2x16x8xf32, #tpu.memory_space<vmem>>, vector<1x1x1x16x8xf32>
    %5 = vector.shape_cast %4 : vector<1x1x1x16x8xf32> to vector<1x16x8xf32>
    %6 = tpu.concatenate %1, %3, %5 in 0 : vector<1x16x8xf32>, vector<8x16x8xf32>, vector<1x16x8xf32> -> vector<10x16x8xf32>
    %7 = vector.extract_strided_slice %6 {offsets = [0, 1, 0], sizes = [10, 1, 8], strides = [1, 1, 1]} : vector<10x16x8xf32> to vector<10x1x8xf32>
    %8 = vector.extract_strided_slice %6 {offsets = [0, 14, 0], sizes = [10, 1, 8], strides = [1, 1, 1]} : vector<10x16x8xf32> to vector<10x1x8xf32>
    %9 = tpu.concatenate %7, %6, %8 in 1 : vector<10x1x8xf32>, vector<10x16x8xf32>, vector<10x1x8xf32> -> vector<10x18x8xf32>
    %10 = vector.extract_strided_slice %9 {offsets = [0, 0, 0], sizes = [8, 16, 8], strides = [1, 1, 1]} : vector<10x18x8xf32> to vector<8x16x8xf32>
    %11 = vector.extract_strided_slice %9 {offsets = [0, 1, 0], sizes = [8, 16, 8], strides = [1, 1, 1]} : vector<10x18x8xf32> to vector<8x16x8xf32>
    %12 = vector.extract_strided_slice %9 {offsets = [0, 2, 0], sizes = [8, 16, 8], strides = [1, 1, 1]} : vector<10x18x8xf32> to vector<8x16x8xf32>
    %13 = vector.extract_strided_slice %9 {offsets = [1, 0, 0], sizes = [8, 16, 8], strides = [1, 1, 1]} : vector<10x18x8xf32> to vector<8x16x8xf32>
    %14 = vector.extract_strided_slice %9 {offsets = [1, 1, 0], sizes = [8, 16, 8], strides = [1, 1, 1]} : vector<10x18x8xf32> to vector<8x16x8xf32>
    %15 = vector.extract_strided_slice %9 {offsets = [1, 2, 0], sizes = [8, 16, 8], strides = [1, 1, 1]} : vector<10x18x8xf32> to vector<8x16x8xf32>
    %16 = vector.extract_strided_slice %9 {offsets = [2, 0, 0], sizes = [8, 16, 8], strides = [1, 1, 1]} : vector<10x18x8xf32> to vector<8x16x8xf32>
    %17 = vector.extract_strided_slice %9 {offsets = [2, 1, 0], sizes = [8, 16, 8], strides = [1, 1, 1]} : vector<10x18x8xf32> to vector<8x16x8xf32>
    %18 = vector.extract_strided_slice %9 {offsets = [2, 2, 0], sizes = [8, 16, 8], strides = [1, 1, 1]} : vector<10x18x8xf32> to vector<8x16x8xf32>
    %19 = tpu.concatenate %10, %11, %12, %13, %14, %15, %16, %17, %18 in 2 : vector<8x16x8xf32>, vector<8x16x8xf32>, vector<8x16x8xf32>, vector<8x16x8xf32>, vector<8x16x8xf32>, vector<8x16x8xf32>, vector<8x16x8xf32>, vector<8x16x8xf32>, vector<8x16x8xf32> -> vector<8x16x72xf32>
    %20 = vector.shape_cast %19 : vector<8x16x72xf32> to vector<128x72xf32>
    %c0_12 = arith.constant 0 : index
    %c0_13 = arith.constant 0 : index
    %21 = vector.load %arg5[%c0_12, %c0_13] : memref<72x128xf32, #tpu.memory_space<vmem>>, vector<72x128xf32>
    %cst = arith.constant dense<0.000000e+00> : vector<128x128xf32>
    %22 = tpu.matmul %20, %21, %cst {dimension_numbers = #tpu.dot_dimension_numbers<[1], [0], [0], [1], [0, 0, 1, 1], [], []>} : vector<128x72xf32>, vector<72x128xf32>, vector<128x128xf32> -> vector<128x128xf32>
    %c0_14 = arith.constant 0 : index
    %c0_15 = arith.constant 0 : index
    %23 = vector.load %arg6[%c0_14, %c0_15] : memref<1x128xf32, #tpu.memory_space<vmem>>, vector<1x128xf32>
    %24 = vector.broadcast %23 : vector<1x128xf32> to vector<128x128xf32>
    %25 = arith.addf %22, %24 : vector<128x128xf32>
    %cst_16 = arith.constant 0.000000e+00 : f32
    %26 = vector.broadcast %cst_16 : f32 to vector<128x128xf32>
    %27 = arith.maximumf %25, %26 : vector<128x128xf32>
    %28 = vector.shape_cast %27 : vector<128x128xf32> to vector<8x16x128xf32>
    %c0_17 = arith.constant 0 : index
    %c0_18 = arith.constant 0 : index
    %c0_19 = arith.constant 0 : index
    %c0_20 = arith.constant 0 : index
    %29 = vector.load %arg7[%c0_17, %c0_18, %c0_19, %c0_20] : memref<1x8x16x128xf32, #tpu.memory_space<vmem>>, vector<1x8x16x128xf32>
    %30 = vector.shape_cast %29 : vector<1x8x16x128xf32> to vector<8x16x128xf32>
    %31 = vector.shape_cast %28 : vector<8x16x128xf32> to vector<1x8x16x128xf32>
    tpu.vector_store %arg7[%c0_17, %c0_18, %c0_19, %c0_20], %31 {strides = array<i32>} : memref<1x8x16x128xf32, #tpu.memory_space<vmem>>, vector<1x8x16x128xf32>,
    return
  }
  func.func @transform_0(%arg0: i32, %arg1: i32, %arg2: i32) -> (i32, i32, i32, i32) {
    %c0_i32 = arith.constant 0 : i32
    %c0_i32_0 = arith.constant 0 : i32
    %c0_i32_1 = arith.constant 0 : i32
    return %arg1, %arg2, %c0_i32, %c0_i32_0 : i32, i32, i32, i32
  }
  func.func @transform_1(%arg0: i32, %arg1: i32, %arg2: i32) -> (i32, i32, i32, i32, i32) {
    %c0_i32 = arith.constant 0 : i32
    %c0_i32_0 = arith.constant 0 : i32
    %c0_i32_1 = arith.constant 0 : i32
    %c0_i32_2 = arith.constant 0 : i32
    return %arg1, %arg2, %c0_i32, %c0_i32_0, %c0_i32_1 : i32, i32, i32, i32, i32
  }
  func.func @transform_2(%arg0: i32, %arg1: i32, %arg2: i32) -> (i32, i32) {
    %c0_i32 = arith.constant 0 : i32
    %c0_i32_0 = arith.constant 0 : i32
    return %c0_i32, %arg0 : i32, i32
  }
  func.func @transform_3(%arg0: i32, %arg1: i32, %arg2: i32) -> (i32, i32) {
    %c0_i32 = arith.constant 0 : i32
    %c0_i32_0 = arith.constant 0 : i32
    return %c0_i32, %arg0 : i32, i32
  }
  func.func @transform_4(%arg0: i32, %arg1: i32, %arg2: i32) -> (i32, i32, i32, i32) {
    %c0_i32 = arith.constant 0 : i32
    %c0_i32_0 = arith.constant 0 : i32
    return %arg1, %arg2, %c0_i32, %arg0 : i32, i32, i32, i32
  }
}

</mosaic_0001>

<llo_original>
// kernel: tpu_custom_call.1
$region0: #{tpu_custom_call.1}
  #allocation0 [shape = 'u32[]', space=smem, size = 0x4, offset = 0x4, fixed_abs, tag = 'smem constant byte address 0x4 - core index']
  #allocation1 [shape = 'u32[144,128]{1,0:T(1,128)}', space=vmem, size = 0x12000, scoped, tag = 'internal scratch']
  %s0 = inlined_call_operand.vmem [shape: f32[2,16,16,8], index: 0, kind: input, shape index: {}]
  %s1 = inlined_call_operand.vmem [shape: f32[2,2,2,16,8], index: 1, kind: input, shape index: {}]
  %s2 = inlined_call_operand.vmem [shape: f32[72,128], index: 2, kind: input, shape index: {}]
  %s3 = inlined_call_operand.vmem [shape: f32[1,128], index: 3, kind: input, shape index: {}]
  %s4 = inlined_call_operand.hbm [shape: f32[2,16,16,128], index: 4, kind: output, shape index: {}]
  %s5 = sld [smem:[#allocation0]]
  $region49: #{tpu_custom_call.1} parent=0
    _
  %s7 = ssub.s32 1, %s5
  %s8 = scalar_select 0, %s7, %s5
  $region1: #{tpu_custom_call.1} parent=0
    #allocation2 [shape = 'u8[131072]{0}', space=vmem, size = 0x20000, scoped, tag = 'output window, operand 0']
    #allocation3 [shape = 's32[2]{0}', space=sflag, size = 0x8, scoped, tag = 'scoped memory for tpu_custom_call.1']
    %9 = vsyncpa [#allocation3], 0
    %s10 = scalar_lea.sflag [#allocation3], 1
    %11 = vsyncpa %s10, 0
    loop: start=0, step=1, limit=6
    $region2: #{tpu_custom_call.1} parent=1 // loop_pre_header
      _
    $region3: #{tpu_custom_call.1} parent=1 // loop_header
      %s13 = sphi 0, %s17
      %p14 = scmp.ge.s32.totalorder %s13, 6
      %s20 = sphi 0, %s39
      %s21 = sphi 0, %s35
      %s22 = sphi 0, %s31
      %s23 = sphi 0, %s20
      %s24 = sphi 0, %s21
      %s25 = sphi 0, %s22
      %s26 = sphi 0, %s23
      %s27 = sphi 0, %s24
      %s28 = sphi 0, %s25
      %s44 = sphi 0, %s46
      %s47 = sphi 0, %s44
      %s48 = sphi 0, %s47
      %s64 = sphi 0, %s48
      %s72 = sphi 0, %s74
      %s75 = sphi 0, %s72
      %s76 = sphi 0, %s75
      %s92 = sphi 0, %s76
      %s98 = sphi 0, %s100
      %s101 = sphi 0, %s98
      %s102 = sphi 0, %s101
      %s118 = sphi 0, %s102
      %s124 = sphi 0, %s126
      %s127 = sphi 0, %s124
      %s128 = sphi 0, %s127
      %s144 = sphi 0, %s128
      %s154 = sphi 0, %s156
      %s157 = sphi 0, %s154
      %s158 = sphi 0, %s157
      %s174 = sphi 0, %s158
    $region4: #{tpu_custom_call.1} parent=1 // loop_header_branch
      %16 = sbr.rel (%p14) target = $region8
    $region5: #{tpu_custom_call.1} parent=1 // loop_body
      %s18 = ssub.s32 %s13, 1
      %s19 = ssub.s32 %s13, 2
      %s29 = sadd.s32 1, %s22
      %p30 = scmp.ge.s32.totalorder %s29, 2
      %s31 = scalar_select %p30, 0, %s29
      %s32 = sadd.s32 1, %s21
      %s33 = scalar_select %p30, %s32, %s21
      %p34 = scmp.ge.s32.totalorder %s33, 2
      %s35 = scalar_select %p34, 0, %s33
      %s36 = sadd.s32 1, %s20
      %s37 = scalar_select %p34, %s36, %s20
      %p38 = scmp.ge.s32.totalorder %s37, 1
      %s39 = scalar_select %p38, 0, %s37
      %s40 = ssub.s32 %s21, %s35
      %s41 = ssub.s32 %s22, %s31
      %s42 = sor.u32 %s40, %s41
      %p43 = scmp.eq.s32.totalorder %s42, 0
      %s45 = sadd.s32 %s44, 1
      %s46 = scalar_select %p43, %s44, %s45
      %p49 = pneg %p43
      %p50 = scmp.eq.s32.totalorder %s13, 3
      %p51 = por %p49, %p50
      %p52 = scmp.ne.s32.totalorder %s44, %s47
      %p53 = scmp.eq.s32.totalorder %s13, 0
      %p54 = por %p52, %p53
      %p55 = scmp.ne.s32.totalorder %s44, %s47
      %p56 = scmp.eq.s32.totalorder %s18, 3
      %p57 = por %p55, %p56
      %p58 = scmp.ne.s32.totalorder %s47, %s48
      %p59 = scmp.eq.s32.totalorder %s18, 0
      %p60 = por %p58, %p59
      %p61 = scmp.ne.s32.totalorder %s47, %s48
      %p62 = scmp.eq.s32.totalorder %s19, 3
      %p63 = por %p61, %p62
      %p65 = scmp.ne.s32.totalorder %s48, %s64
      %p66 = scmp.eq.s32.totalorder %s19, 0
      %p67 = por %p65, %p66
      %s68 = ssub.s32 %s21, %s35
      %s69 = ssub.s32 %s22, %s31
      %s70 = sor.u32 %s68, %s69
      %p71 = scmp.eq.s32.totalorder %s70, 0
      %s73 = sadd.s32 %s72, 1
      %s74 = scalar_select %p71, %s72, %s73
      %p77 = pneg %p71
      %p78 = scmp.eq.s32.totalorder %s13, 3
      %p79 = por %p77, %p78
      %p80 = scmp.ne.s32.totalorder %s72, %s75
      %p81 = scmp.eq.s32.totalorder %s13, 0
      %p82 = por %p80, %p81
      %p83 = scmp.ne.s32.totalorder %s72, %s75
      %p84 = scmp.eq.s32.totalorder %s18, 3
      %p85 = por %p83, %p84
      %p86 = scmp.ne.s32.totalorder %s75, %s76
      %p87 = scmp.eq.s32.totalorder %s18, 0
      %p88 = por %p86, %p87
      %p89 = scmp.ne.s32.totalorder %s75, %s76
      %p90 = scmp.eq.s32.totalorder %s19, 3
      %p91 = por %p89, %p90
      %p93 = scmp.ne.s32.totalorder %s76, %s92
      %p94 = scmp.eq.s32.totalorder %s19, 0
      %p95 = por %p93, %p94
      %s96 = ssub.s32 %s20, %s39
      %p97 = scmp.eq.s32.totalorder %s96, 0
      %s99 = sadd.s32 %s98, 1
      %s100 = scalar_select %p97, %s98, %s99
      %p103 = pneg %p97
      %p104 = scmp.eq.s32.totalorder %s13, 3
      %p105 = por %p103, %p104
      %p106 = scmp.ne.s32.totalorder %s98, %s101
      %p107 = scmp.eq.s32.totalorder %s13, 0
      %p108 = por %p106, %p107
      %p109 = scmp.ne.s32.totalorder %s98, %s101
      %p110 = scmp.eq.s32.totalorder %s18, 3
      %p111 = por %p109, %p110
      %p112 = scmp.ne.s32.totalorder %s101, %s102
      %p113 = scmp.eq.s32.totalorder %s18, 0
      %p114 = por %p112, %p113
      %p115 = scmp.ne.s32.totalorder %s101, %s102
      %p116 = scmp.eq.s32.totalorder %s19, 3
      %p117 = por %p115, %p116
      %p119 = scmp.ne.s32.totalorder %s102, %s118
      %p120 = scmp.eq.s32.totalorder %s19, 0
      %p121 = por %p119, %p120
      %s122 = ssub.s32 %s20, %s39
      %p123 = scmp.eq.s32.totalorder %s122, 0
      %s125 = sadd.s32 %s124, 1
      %s126 = scalar_select %p123, %s124, %s125
      %p129 = pneg %p123
      %p130 = scmp.eq.s32.totalorder %s13, 3
      %p131 = por %p129, %p130
      %p132 = scmp.ne.s32.totalorder %s124, %s127
      %p133 = scmp.eq.s32.totalorder %s13, 0
      %p134 = por %p132, %p133
      %p135 = scmp.ne.s32.totalorder %s124, %s127
      %p136 = scmp.eq.s32.totalorder %s18, 3
      %p137 = por %p135, %p136
      %p138 = scmp.ne.s32.totalorder %s127, %s128
      %p139 = scmp.eq.s32.totalorder %s18, 0
      %p140 = por %p138, %p139
      %p141 = scmp.ne.s32.totalorder %s127, %s128
      %p142 = scmp.eq.s32.totalorder %s19, 3
      %p143 = por %p141, %p142
      %p145 = scmp.ne.s32.totalorder %s128, %s144
      %p146 = scmp.eq.s32.totalorder %s19, 0
      %p147 = por %p145, %p146
      %s148 = ssub.s32 %s21, %s35
      %s149 = ssub.s32 %s22, %s31
      %s150 = sor.u32 %s148, %s149
      %s151 = ssub.s32 %s20, %s39
      %s152 = sor.u32 %s150, %s151
      %p153 = scmp.eq.s32.totalorder %s152, 0
      %s155 = sadd.s32 %s154, 1
      %s156 = scalar_select %p153, %s154, %s155
      %p159 = pneg %p153
      %p160 = scmp.eq.s32.totalorder %s13, 3
      %p161 = por %p159, %p160
      %p162 = scmp.ne.s32.totalorder %s154, %s157
      %p163 = scmp.eq.s32.totalorder %s13, 0
      %p164 = por %p162, %p163
      %p165 = scmp.ne.s32.totalorder %s154, %s157
      %p166 = scmp.eq.s32.totalorder %s18, 3
      %p167 = por %p165, %p166
      %p168 = scmp.ne.s32.totalorder %s157, %s158
      %p169 = scmp.eq.s32.totalorder %s18, 0
      %p170 = por %p168, %p169
      %p171 = scmp.ne.s32.totalorder %s157, %s158
      %p172 = scmp.eq.s32.totalorder %s19, 3
      %p173 = por %p171, %p172
      %p175 = scmp.ne.s32.totalorder %s158, %s174
      %p176 = scmp.eq.s32.totalorder %s19, 0
      %p177 = por %p175, %p176
      %p178 = scmp.le.s32.totalorder 1, %s13
      %p179 = scmp.lt.s32.totalorder %s13, 5
      %p180 = pnand %p178, %p179
      %p181 = pneg %p180
      // Predicated region
      $region9: #{tpu_custom_call.1} parent=5 // pred_check
        _
      $region10: #{tpu_custom_call.1} parent=5 // pred_check_branch
        %183 = sbr.rel (%p180) target = $region12
      $region11: #{tpu_custom_call.1} parent=5 // pred_region
        %s184 = ssub.s32 %s13, 1
        // Predicated region
        $region13: #{tpu_custom_call.1} parent=11 // pred_check
          %p185 = pneg %p114
        $region14: #{tpu_custom_call.1} parent=11 // pred_check_branch
          %187 = sbr.rel (%p185) target = $region16
        $region15: #{tpu_custom_call.1} parent=11 // pred_region
          %p188 = scmp.lt.s32.totalorder %s23, 0
          %s189 = scalar_select %p188, %s23, 0
          %s190 = smul.addr %s189, 8
          %s191 = scalar_lea.vmem %s2, %s190
        $region16: #{tpu_custom_call.1} parent=11 // pred_fallthru
          _
        // Predicated region
        $region17: #{tpu_custom_call.1} parent=11 // pred_check
          %p192 = pneg %p140
        $region18: #{tpu_custom_call.1} parent=11 // pred_check_branch
          %194 = sbr.rel (%p192) target = $region20
        $region19: #{tpu_custom_call.1} parent=11 // pred_region
          %p195 = scmp.lt.s32.totalorder %s23, 0
          %s196 = scalar_select %p195, %s23, 0
          %s197 = scalar_lea.vmem %s3, %s196
        $region20: #{tpu_custom_call.1} parent=11 // pred_fallthru
          _
      $region12: #{tpu_custom_call.1} parent=5 // pred_fallthru
        _
      %p198 = scmp.lt.s32.totalorder %s13, 4
      // Predicated region
      $region21: #{tpu_custom_call.1} parent=5 // pred_check
        %p199 = pneg %p198
      $region22: #{tpu_custom_call.1} parent=5 // pred_check_branch
        %201 = sbr.rel (%p199) target = $region24
      $region23: #{tpu_custom_call.1} parent=5 // pred_region
        // Predicated region
        $region25: #{tpu_custom_call.1} parent=23 // pred_check
          %p202 = pneg %p54
        $region26: #{tpu_custom_call.1} parent=23 // pred_check_branch
          %204 = sbr.rel (%p202) target = $region28
        $region27: #{tpu_custom_call.1} parent=23 // pred_region
          %s205 = smul.u32 8, %s22
          %p206 = scmp.lt.s32.totalorder %s21, 1
          %s207 = scalar_select %p206, %s21, 1
          %p208 = scmp.lt.s32.totalorder %s205, 15
          %s209 = scalar_select %p208, %s205, 15
          %s210 = smul.addr %s209, 2
          %s211 = smul.addr %s207, 32
          %s212 = sadd.s32 %s210, %s211
          %s213 = smul.addr %s212, 8
          %s214 = scalar_lea.vmem %s0, %s213
          %s215 = smul.u32 8, %s22
        $region28: #{tpu_custom_call.1} parent=23 // pred_fallthru
          _
        // Predicated region
        $region29: #{tpu_custom_call.1} parent=23 // pred_check
          %p216 = pneg %p82
        $region30: #{tpu_custom_call.1} parent=23 // pred_check_branch
          %218 = sbr.rel (%p216) target = $region32
        $region31: #{tpu_custom_call.1} parent=23 // pred_region
          %p219 = scmp.lt.s32.totalorder %s21, 1
          %s220 = scalar_select %p219, %s21, 1
          %p221 = scmp.lt.s32.totalorder %s22, 1
          %s222 = scalar_select %p221, %s22, 1
          %s223 = smul.addr %s222, 4
          %s224 = smul.addr %s220, 8
          %s225 = sadd.s32 %s223, %s224
          %s226 = smul.addr %s225, 8
          %s227 = scalar_lea.vmem %s1, %s226
        $region32: #{tpu_custom_call.1} parent=23 // pred_fallthru
          _
      $region24: #{tpu_custom_call.1} parent=5 // pred_fallthru
        _
      %p228 = scmp.le.s32.totalorder 1, %s13
      %p229 = scmp.lt.s32.totalorder %s13, 5
      %p230 = pnand %p228, %p229
      %p231 = pneg %p230
      // Predicated region
      $region33: #{tpu_custom_call.1} parent=5 // pred_check
        _
      $region34: #{tpu_custom_call.1} parent=5 // pred_check_branch
        %233 = sbr.rel (%p230) target = $region36
      $region35: #{tpu_custom_call.1} parent=5 // pred_region
        %s234 = ssub.s32 %s13, 1
        %s235 = smul.u32 8, %s25
        %p236 = scmp.lt.s32.totalorder %s24, 1
        %s237 = scalar_select %p236, %s24, 1
        %p238 = scmp.lt.s32.totalorder %s235, 15
        %s239 = scalar_select %p238, %s235, 15
        %s240 = smul.addr %s239, 2
        %s241 = smul.addr %s237, 32
        %s242 = sadd.s32 %s240, %s241
        %s243 = smul.addr %s242, 8
        %s244 = scalar_lea.vmem %s0, %s243
        %p245 = pneg %p60
        %p246 = pneg %p57
        %p247 = scmp.lt.s32.totalorder %s24, 1
        %s248 = scalar_select %p247, %s24, 1
        %p249 = scmp.lt.s32.totalorder %s25, 1
        %s250 = scalar_select %p249, %s25, 1
        %s251 = smul.addr %s250, 4
        %s252 = smul.addr %s248, 8
        %s253 = sadd.s32 %s251, %s252
        %s254 = smul.addr %s253, 8
        %s255 = scalar_lea.vmem %s1, %s254
        %p256 = pneg %p88
        %p257 = pneg %p85
        %p258 = scmp.lt.s32.totalorder %s23, 0
        %s259 = scalar_select %p258, %s23, 0
        %s260 = smul.addr %s259, 8
        %s261 = scalar_lea.vmem %s2, %s260
        %p262 = pneg %p114
        %p263 = pneg %p111
        %p264 = scmp.lt.s32.totalorder %s23, 0
        %s265 = scalar_select %p264, %s23, 0
        %s266 = scalar_lea.vmem %s3, %s265
        %p267 = pneg %p140
        %p268 = pneg %p137
        %p269 = pneg %p170
        %p270 = pneg %p167
        %s271 = sand.u32 %s157, 1
        %s272 = scalar_lea.sflag [#allocation3], %s271
        %s273 = sand.u32 %s157, 1
        %s274 = smul.addr %s273, 128
        %s275 = scalar_lea.vmem [#allocation2], %s274
        %s276 = smul.u32 8, %s25
        %p277 = scmp.lt.s32.totalorder %s24, 1
        %s278 = scalar_select %p277, %s24, 1
        %p279 = scmp.lt.s32.totalorder %s276, 15
        %s280 = scalar_select %p279, %s276, 15
        %s281 = smul.addr %s280, 2
        %s282 = smul.addr %s278, 32
        %s283 = sadd.s32 %s281, %s282
        %s284 = smul.addr %s283, 8
        %s285 = scalar_lea.vmem %s0, %s284
        %s286 = smul.u32 8, %s25
        %p287 = scmp.lt.s32.totalorder %s24, 1
        %s288 = scalar_select %p287, %s24, 1
        %p289 = scmp.lt.s32.totalorder %s25, 1
        %s290 = scalar_select %p289, %s25, 1
        %s291 = smul.addr %s290, 4
        %s292 = smul.addr %s288, 8
        %s293 = sadd.s32 %s291, %s292
        %s294 = smul.addr %s293, 8
        %s295 = scalar_lea.vmem %s1, %s294
        %p296 = scmp.lt.s32.totalorder %s23, 0
        %s297 = scalar_select %p296, %s23, 0
        %s298 = smul.addr %s297, 8
        %s299 = scalar_lea.vmem %s2, %s298
        %p300 = scmp.lt.s32.totalorder %s23, 0
        %s301 = scalar_select %p300, %s23, 0
        %s302 = scalar_lea.vmem %s3, %s301
        %s303 = smul.u32 8, %s25
        %v304 = vld [vmem:[%s295] sm:$0xff]
        %v305 = vld [vmem:[%s295 + $0x8] sm:$0xff]
        %v306 = vld [vmem:[%s285] sm:$0xff]
        %v307 = vld [vmem:[%s285 + $0x8] sm:$0xff]
        %v308 = vld [vmem:[%s285 + $0x10] sm:$0xff]
        %v309 = vld [vmem:[%s285 + $0x18] sm:$0xff]
        %v310 = vld [vmem:[%s285 + $0x20] sm:$0xff]
        %v311 = vld [vmem:[%s285 + $0x28] sm:$0xff]
        %v312 = vld [vmem:[%s285 + $0x30] sm:$0xff]
        %v313 = vld [vmem:[%s285 + $0x38] sm:$0xff]
        %v314 = vld [vmem:[%s285 + $0x40] sm:$0xff]
        %v315 = vld [vmem:[%s285 + $0x48] sm:$0xff]
        %v316 = vld [vmem:[%s285 + $0x50] sm:$0xff]
        %v317 = vld [vmem:[%s285 + $0x58] sm:$0xff]
        %v318 = vld [vmem:[%s285 + $0x60] sm:$0xff]
        %v319 = vld [vmem:[%s285 + $0x68] sm:$0xff]
        %v320 = vld [vmem:[%s285 + $0x70] sm:$0xff]
        %v321 = vld [vmem:[%s285 + $0x78] sm:$0xff]
        %s322 = scalar_lea.vmem %s295, 16
        %v323 = vld [vmem:[%s322] sm:$0xff]
        %v324 = vld [vmem:[%s322 + $0x8] sm:$0xff]
        %v335 = vrot.slane %v304, 1
        %v336 = vrot.slane %v306, 1
        %v337 = vrot.slane %v308, 1
        %v338 = vrot.slane %v310, 1
        %v339 = vrot.slane %v312, 1
        %v340 = vrot.slane %v314, 1
        %v341 = vrot.slane %v316, 1
        %v342 = vrot.slane %v318, 1
        %v343 = vrot.slane %v320, 1
        %v344 = vrot.slane %v323, 1
        %vm365 = vcmask 1040384
        %v366 = vrot.slane %v304, 7
        %v367 = vrot.slane %v305, 7
        %v368 = vsel %vm365, %v366, %v367
        %v369 = vrot.slane %v306, 7
        %v370 = vrot.slane %v307, 7
        %v371 = vsel %vm365, %v369, %v370
        %v372 = vrot.slane %v308, 7
        %v373 = vrot.slane %v309, 7
        %v374 = vsel %vm365, %v372, %v373
        %v375 = vrot.slane %v310, 7
        %v376 = vrot.slane %v311, 7
        %v377 = vsel %vm365, %v375, %v376
        %v378 = vrot.slane %v312, 7
        %v379 = vrot.slane %v313, 7
        %v380 = vsel %vm365, %v378, %v379
        %v381 = vrot.slane %v314, 7
        %v382 = vrot.slane %v315, 7
        %v383 = vsel %vm365, %v381, %v382
        %v384 = vrot.slane %v316, 7
        %v385 = vrot.slane %v317, 7
        %v386 = vsel %vm365, %v384, %v385
        %v387 = vrot.slane %v318, 7
        %v388 = vrot.slane %v319, 7
        %v389 = vsel %vm365, %v387, %v388
        %v390 = vrot.slane %v320, 7
        %v391 = vrot.slane %v321, 7
        %v392 = vsel %vm365, %v390, %v391
        %v393 = vrot.slane %v323, 7
        %v394 = vrot.slane %v324, 7
        %v395 = vsel %vm365, %v393, %v394
        %v424 = vrot.slane %v305, 5
        %v425 = vrot.slane %v307, 5
        %v426 = vrot.slane %v309, 5
        %v427 = vrot.slane %v311, 5
        %v428 = vrot.slane %v313, 5
        %v429 = vrot.slane %v315, 5
        %v430 = vrot.slane %v317, 5
        %v431 = vrot.slane %v319, 5
        %v432 = vrot.slane %v321, 5
        %v433 = vrot.slane %v324, 5
        %v444 = vsel %vm365, %v335, %v366
        %v445 = vsel %vm365, %v336, %v369
        %v446 = vsel %vm365, %v337, %v372
        %v447 = vsel %vm365, %v338, %v375
        %v448 = vsel %vm365, %v339, %v378
        %v449 = vsel %vm365, %v340, %v381
        %v450 = vsel %vm365, %v341, %v384
        %v451 = vsel %vm365, %v342, %v387
        %v452 = vsel %vm365, %v343, %v390
        %v453 = vsel %vm365, %v344, %v393
        %v454 = vsel %vm365, %v367, %v424
        %v455 = vsel %vm365, %v370, %v425
        %v456 = vsel %vm365, %v373, %v426
        %v457 = vsel %vm365, %v376, %v427
        %v458 = vsel %vm365, %v379, %v428
        %v459 = vsel %vm365, %v382, %v429
        %v460 = vsel %vm365, %v385, %v430
        %v461 = vsel %vm365, %v388, %v431
        %v462 = vsel %vm365, %v391, %v432
        %v463 = vsel %vm365, %v394, %v433
        %vm480 = vcmask 1046528
        %v481 = vrot.slane %v444, 1
        %v482 = vrot.slane %v368, 1
        %v483 = vsel %vm480, %v481, %v482
        %v484 = vrot.slane %v454, 1
        %v485 = vsel %vm480, %v482, %v484
        %v486 = vrot.slane %v445, 1
        %v487 = vrot.slane %v371, 1
        %v488 = vsel %vm480, %v486, %v487
        %v489 = vrot.slane %v455, 1
        %v490 = vsel %vm480, %v487, %v489
        %v491 = vrot.slane %v446, 1
        %v492 = vrot.slane %v374, 1
        %v493 = vsel %vm480, %v491, %v492
        %v494 = vrot.slane %v456, 1
        %v495 = vsel %vm480, %v492, %v494
        %v496 = vrot.slane %v447, 1
        %v497 = vrot.slane %v377, 1
        %v498 = vsel %vm480, %v496, %v497
        %v499 = vrot.slane %v457, 1
        %v500 = vsel %vm480, %v497, %v499
        %v501 = vrot.slane %v448, 1
        %v502 = vrot.slane %v380, 1
        %v503 = vsel %vm480, %v501, %v502
        %v504 = vrot.slane %v458, 1
        %v505 = vsel %vm480, %v502, %v504
        %v506 = vrot.slane %v449, 1
        %v507 = vrot.slane %v383, 1
        %v508 = vsel %vm480, %v506, %v507
        %v509 = vrot.slane %v459, 1
        %v510 = vsel %vm480, %v507, %v509
        %v511 = vrot.slane %v450, 1
        %v512 = vrot.slane %v386, 1
        %v513 = vsel %vm480, %v511, %v512
        %v514 = vrot.slane %v460, 1
        %v515 = vsel %vm480, %v512, %v514
        %v516 = vrot.slane %v451, 1
        %v517 = vrot.slane %v389, 1
        %v518 = vsel %vm480, %v516, %v517
        %v519 = vrot.slane %v461, 1
        %v520 = vsel %vm480, %v517, %v519
        %521 = vrot.lane.b32.xlu0 %v483, 8
        %v522 = vpop.permute.xlu0 %521
        %523 = vrot.lane.b32.xlu0 %v485, 8
        %v524 = vpop.permute.xlu0 %523
        %525 = vrot.lane.b32.xlu0 %v488, 8
        %v526 = vpop.permute.xlu0 %525
        %527 = vrot.lane.b32.xlu0 %v490, 8
        %v528 = vpop.permute.xlu0 %527
        %529 = vrot.lane.b32.xlu0 %v493, 8
        %v530 = vpop.permute.xlu0 %529
        %531 = vrot.lane.b32.xlu0 %v495, 8
        %v532 = vpop.permute.xlu0 %531
        %533 = vrot.lane.b32.xlu0 %v498, 8
        %v534 = vpop.permute.xlu0 %533
        %535 = vrot.lane.b32.xlu0 %v500, 8
        %v536 = vpop.permute.xlu0 %535
        %537 = vrot.lane.b32.xlu0 %v503, 8
        %v538 = vpop.permute.xlu0 %537
        %539 = vrot.lane.b32.xlu0 %v505, 8
        %v540 = vpop.permute.xlu0 %539
        %541 = vrot.lane.b32.xlu0 %v508, 8
        %v542 = vpop.permute.xlu0 %541
        %543 = vrot.lane.b32.xlu0 %v510, 8
        %v544 = vpop.permute.xlu0 %543
        %545 = vrot.lane.b32.xlu0 %v513, 8
        %v546 = vpop.permute.xlu0 %545
        %547 = vrot.lane.b32.xlu0 %v515, 8
        %v548 = vpop.permute.xlu0 %547
        %549 = vrot.lane.b32.xlu0 %v518, 8
        %v550 = vpop.permute.xlu0 %549
        %551 = vrot.lane.b32.xlu0 %v520, 8
        %v552 = vpop.permute.xlu0 %551
        %vm569 = vcmask 1045504
        %v570 = vrot.slane %v444, 2
        %v571 = vrot.slane %v368, 2
        %v572 = vsel %vm569, %v570, %v571
        %v573 = vrot.slane %v454, 2
        %v574 = vsel %vm569, %v571, %v573
        %v575 = vrot.slane %v445, 2
        %v576 = vrot.slane %v371, 2
        %v577 = vsel %vm569, %v575, %v576
        %v578 = vrot.slane %v455, 2
        %v579 = vsel %vm569, %v576, %v578
        %v580 = vrot.slane %v446, 2
        %v581 = vrot.slane %v374, 2
        %v582 = vsel %vm569, %v580, %v581
        %v583 = vrot.slane %v456, 2
        %v584 = vsel %vm569, %v581, %v583
        %v585 = vrot.slane %v447, 2
        %v586 = vrot.slane %v377, 2
        %v587 = vsel %vm569, %v585, %v586
        %v588 = vrot.slane %v457, 2
        %v589 = vsel %vm569, %v586, %v588
        %v590 = vrot.slane %v448, 2
        %v591 = vrot.slane %v380, 2
        %v592 = vsel %vm569, %v590, %v591
        %v593 = vrot.slane %v458, 2
        %v594 = vsel %vm569, %v591, %v593
        %v595 = vrot.slane %v449, 2
        %v596 = vrot.slane %v383, 2
        %v597 = vsel %vm569, %v595, %v596
        %v598 = vrot.slane %v459, 2
        %v599 = vsel %vm569, %v596, %v598
        %v600 = vrot.slane %v450, 2
        %v601 = vrot.slane %v386, 2
        %v602 = vsel %vm569, %v600, %v601
        %v603 = vrot.slane %v460, 2
        %v604 = vsel %vm569, %v601, %v603
        %v605 = vrot.slane %v451, 2
        %v606 = vrot.slane %v389, 2
        %v607 = vsel %vm569, %v605, %v606
        %v608 = vrot.slane %v461, 2
        %v609 = vsel %vm569, %v606, %v608
        %610 = vrot.lane.b32.xlu0 %v572, 16
        %v611 = vpop.permute.xlu0 %610
        %612 = vrot.lane.b32.xlu0 %v574, 16
        %v613 = vpop.permute.xlu0 %612
        %614 = vrot.lane.b32.xlu0 %v577, 16
        %v615 = vpop.permute.xlu0 %614
        %616 = vrot.lane.b32.xlu0 %v579, 16
        %v617 = vpop.permute.xlu0 %616
        %618 = vrot.lane.b32.xlu0 %v582, 16
        %v619 = vpop.permute.xlu0 %618
        %620 = vrot.lane.b32.xlu0 %v584, 16
        %v621 = vpop.permute.xlu0 %620
        %622 = vrot.lane.b32.xlu0 %v587, 16
        %v623 = vpop.permute.xlu0 %622
        %624 = vrot.lane.b32.xlu0 %v589, 16
        %v625 = vpop.permute.xlu0 %624
        %626 = vrot.lane.b32.xlu0 %v592, 16
        %v627 = vpop.permute.xlu0 %626
        %628 = vrot.lane.b32.xlu0 %v594, 16
        %v629 = vpop.permute.xlu0 %628
        %630 = vrot.lane.b32.xlu0 %v597, 16
        %v631 = vpop.permute.xlu0 %630
        %632 = vrot.lane.b32.xlu0 %v599, 16
        %v633 = vpop.permute.xlu0 %632
        %634 = vrot.lane.b32.xlu0 %v602, 16
        %v635 = vpop.permute.xlu0 %634
        %636 = vrot.lane.b32.xlu0 %v604, 16
        %v637 = vpop.permute.xlu0 %636
        %638 = vrot.lane.b32.xlu0 %v607, 16
        %v639 = vpop.permute.xlu0 %638
        %640 = vrot.lane.b32.xlu0 %v609, 16
        %v641 = vpop.permute.xlu0 %640
        %659 = vrot.lane.b32.xlu0 %v445, 24
        %v660 = vpop.permute.xlu0 %659
        %661 = vrot.lane.b32.xlu0 %v371, 24
        %v662 = vpop.permute.xlu0 %661
        %663 = vrot.lane.b32.xlu0 %v446, 24
        %v664 = vpop.permute.xlu0 %663
        %665 = vrot.lane.b32.xlu0 %v374, 24
        %v666 = vpop.permute.xlu0 %665
        %667 = vrot.lane.b32.xlu0 %v447, 24
        %v668 = vpop.permute.xlu0 %667
        %669 = vrot.lane.b32.xlu0 %v377, 24
        %v670 = vpop.permute.xlu0 %669
        %671 = vrot.lane.b32.xlu0 %v448, 24
        %v672 = vpop.permute.xlu0 %671
        %673 = vrot.lane.b32.xlu0 %v380, 24
        %v674 = vpop.permute.xlu0 %673
        %675 = vrot.lane.b32.xlu0 %v449, 24
        %v676 = vpop.permute.xlu0 %675
        %677 = vrot.lane.b32.xlu0 %v383, 24
        %v678 = vpop.permute.xlu0 %677
        %679 = vrot.lane.b32.xlu0 %v450, 24
        %v680 = vpop.permute.xlu0 %679
        %681 = vrot.lane.b32.xlu0 %v386, 24
        %v682 = vpop.permute.xlu0 %681
        %683 = vrot.lane.b32.xlu0 %v451, 24
        %v684 = vpop.permute.xlu0 %683
        %685 = vrot.lane.b32.xlu0 %v389, 24
        %v686 = vpop.permute.xlu0 %685
        %687 = vrot.lane.b32.xlu0 %v452, 24
        %v688 = vpop.permute.xlu0 %687
        %689 = vrot.lane.b32.xlu0 %v392, 24
        %v690 = vpop.permute.xlu0 %689
        %v708 = vrot.slane %v452, 1
        %v709 = vrot.slane %v392, 1
        %v710 = vsel %vm480, %v708, %v709
        %v711 = vrot.slane %v462, 1
        %v712 = vsel %vm480, %v709, %v711
        %713 = vrot.lane.b32.xlu0 %v488, 32
        %v714 = vpop.permute.xlu0 %713
        %715 = vrot.lane.b32.xlu0 %v490, 32
        %v716 = vpop.permute.xlu0 %715
        %717 = vrot.lane.b32.xlu0 %v493, 32
        %v718 = vpop.permute.xlu0 %717
        %719 = vrot.lane.b32.xlu0 %v495, 32
        %v720 = vpop.permute.xlu0 %719
        %721 = vrot.lane.b32.xlu0 %v498, 32
        %v722 = vpop.permute.xlu0 %721
        %723 = vrot.lane.b32.xlu0 %v500, 32
        %v724 = vpop.permute.xlu0 %723
        %725 = vrot.lane.b32.xlu0 %v503, 32
        %v726 = vpop.permute.xlu0 %725
        %727 = vrot.lane.b32.xlu0 %v505, 32
        %v728 = vpop.permute.xlu0 %727
        %729 = vrot.lane.b32.xlu0 %v508, 32
        %v730 = vpop.permute.xlu0 %729
        %731 = vrot.lane.b32.xlu0 %v510, 32
        %v732 = vpop.permute.xlu0 %731
        %733 = vrot.lane.b32.xlu0 %v513, 32
        %v734 = vpop.permute.xlu0 %733
        %735 = vrot.lane.b32.xlu0 %v515, 32
        %v736 = vpop.permute.xlu0 %735
        %737 = vrot.lane.b32.xlu0 %v518, 32
        %v738 = vpop.permute.xlu0 %737
        %739 = vrot.lane.b32.xlu0 %v520, 32
        %v740 = vpop.permute.xlu0 %739
        %741 = vrot.lane.b32.xlu0 %v710, 32
        %v742 = vpop.permute.xlu0 %741
        %743 = vrot.lane.b32.xlu0 %v712, 32
        %v744 = vpop.permute.xlu0 %743
        %v761 = vrot.slane %v452, 2
        %v762 = vrot.slane %v392, 2
        %v763 = vsel %vm569, %v761, %v762
        %v764 = vrot.slane %v462, 2
        %v765 = vsel %vm569, %v762, %v764
        %766 = vrot.lane.b32.xlu0 %v577, 40
        %v767 = vpop.permute.xlu0 %766
        %768 = vrot.lane.b32.xlu0 %v579, 40
        %v769 = vpop.permute.xlu0 %768
        %770 = vrot.lane.b32.xlu0 %v582, 40
        %v771 = vpop.permute.xlu0 %770
        %772 = vrot.lane.b32.xlu0 %v584, 40
        %v773 = vpop.permute.xlu0 %772
        %774 = vrot.lane.b32.xlu0 %v587, 40
        %v775 = vpop.permute.xlu0 %774
        %776 = vrot.lane.b32.xlu0 %v589, 40
        %v777 = vpop.permute.xlu0 %776
        %778 = vrot.lane.b32.xlu0 %v592, 40
        %v779 = vpop.permute.xlu0 %778
        %780 = vrot.lane.b32.xlu0 %v594, 40
        %v781 = vpop.permute.xlu0 %780
        %782 = vrot.lane.b32.xlu0 %v597, 40
        %v783 = vpop.permute.xlu0 %782
        %784 = vrot.lane.b32.xlu0 %v599, 40
        %v785 = vpop.permute.xlu0 %784
        %786 = vrot.lane.b32.xlu0 %v602, 40
        %v787 = vpop.permute.xlu0 %786
        %788 = vrot.lane.b32.xlu0 %v604, 40
        %v789 = vpop.permute.xlu0 %788
        %790 = vrot.lane.b32.xlu0 %v607, 40
        %v791 = vpop.permute.xlu0 %790
        %792 = vrot.lane.b32.xlu0 %v609, 40
        %v793 = vpop.permute.xlu0 %792
        %794 = vrot.lane.b32.xlu0 %v763, 40
        %v795 = vpop.permute.xlu0 %794
        %796 = vrot.lane.b32.xlu0 %v765, 40
        %v797 = vpop.permute.xlu0 %796
        %815 = vrot.lane.b32.xlu0 %v446, 48
        %v816 = vpop.permute.xlu0 %815
        %817 = vrot.lane.b32.xlu0 %v374, 48
        %v818 = vpop.permute.xlu0 %817
        %819 = vrot.lane.b32.xlu0 %v447, 48
        %v820 = vpop.permute.xlu0 %819
        %821 = vrot.lane.b32.xlu0 %v377, 48
        %v822 = vpop.permute.xlu0 %821
        %823 = vrot.lane.b32.xlu0 %v448, 48
        %v824 = vpop.permute.xlu0 %823
        %825 = vrot.lane.b32.xlu0 %v380, 48
        %v826 = vpop.permute.xlu0 %825
        %827 = vrot.lane.b32.xlu0 %v449, 48
        %v828 = vpop.permute.xlu0 %827
        %829 = vrot.lane.b32.xlu0 %v383, 48
        %v830 = vpop.permute.xlu0 %829
        %831 = vrot.lane.b32.xlu0 %v450, 48
        %v832 = vpop.permute.xlu0 %831
        %833 = vrot.lane.b32.xlu0 %v386, 48
        %v834 = vpop.permute.xlu0 %833
        %835 = vrot.lane.b32.xlu0 %v451, 48
        %v836 = vpop.permute.xlu0 %835
        %837 = vrot.lane.b32.xlu0 %v389, 48
        %v838 = vpop.permute.xlu0 %837
        %839 = vrot.lane.b32.xlu0 %v452, 48
        %v840 = vpop.permute.xlu0 %839
        %841 = vrot.lane.b32.xlu0 %v392, 48
        %v842 = vpop.permute.xlu0 %841
        %843 = vrot.lane.b32.xlu0 %v453, 48
        %v844 = vpop.permute.xlu0 %843
        %845 = vrot.lane.b32.xlu0 %v395, 48
        %v846 = vpop.permute.xlu0 %845
        %v864 = vrot.slane %v453, 1
        %v865 = vrot.slane %v395, 1
        %v866 = vsel %vm480, %v864, %v865
        %v867 = vrot.slane %v463, 1
        %v868 = vsel %vm480, %v865, %v867
        %869 = vrot.lane.b32.xlu0 %v493, 56
        %v870 = vpop.permute.xlu0 %869
        %871 = vrot.lane.b32.xlu0 %v495, 56
        %v872 = vpop.permute.xlu0 %871
        %873 = vrot.lane.b32.xlu0 %v498, 56
        %v874 = vpop.permute.xlu0 %873
        %875 = vrot.lane.b32.xlu0 %v500, 56
        %v876 = vpop.permute.xlu0 %875
        %877 = vrot.lane.b32.xlu0 %v503, 56
        %v878 = vpop.permute.xlu0 %877
        %879 = vrot.lane.b32.xlu0 %v505, 56
        %v880 = vpop.permute.xlu0 %879
        %881 = vrot.lane.b32.xlu0 %v508, 56
        %v882 = vpop.permute.xlu0 %881
        %883 = vrot.lane.b32.xlu0 %v510, 56
        %v884 = vpop.permute.xlu0 %883
        %885 = vrot.lane.b32.xlu0 %v513, 56
        %v886 = vpop.permute.xlu0 %885
        %887 = vrot.lane.b32.xlu0 %v515, 56
        %v888 = vpop.permute.xlu0 %887
        %889 = vrot.lane.b32.xlu0 %v518, 56
        %v890 = vpop.permute.xlu0 %889
        %891 = vrot.lane.b32.xlu0 %v520, 56
        %v892 = vpop.permute.xlu0 %891
        %893 = vrot.lane.b32.xlu0 %v710, 56
        %v894 = vpop.permute.xlu0 %893
        %895 = vrot.lane.b32.xlu0 %v712, 56
        %v896 = vpop.permute.xlu0 %895
        %897 = vrot.lane.b32.xlu0 %v866, 56
        %v898 = vpop.permute.xlu0 %897
        %899 = vrot.lane.b32.xlu0 %v868, 56
        %v900 = vpop.permute.xlu0 %899
        %v917 = vrot.slane %v453, 2
        %v918 = vrot.slane %v395, 2
        %v919 = vsel %vm569, %v917, %v918
        %v920 = vrot.slane %v463, 2
        %v921 = vsel %vm569, %v918, %v920
        %922 = vrot.lane.b32.xlu0 %v582, 64
        %v923 = vpop.permute.xlu0 %922
        %924 = vrot.lane.b32.xlu0 %v584, 64
        %v925 = vpop.permute.xlu0 %924
        %926 = vrot.lane.b32.xlu0 %v587, 64
        %v927 = vpop.permute.xlu0 %926
        %928 = vrot.lane.b32.xlu0 %v589, 64
        %v929 = vpop.permute.xlu0 %928
        %930 = vrot.lane.b32.xlu0 %v592, 64
        %v931 = vpop.permute.xlu0 %930
        %932 = vrot.lane.b32.xlu0 %v594, 64
        %v933 = vpop.permute.xlu0 %932
        %934 = vrot.lane.b32.xlu0 %v597, 64
        %v935 = vpop.permute.xlu0 %934
        %936 = vrot.lane.b32.xlu0 %v599, 64
        %v937 = vpop.permute.xlu0 %936
        %938 = vrot.lane.b32.xlu0 %v602, 64
        %v939 = vpop.permute.xlu0 %938
        %940 = vrot.lane.b32.xlu0 %v604, 64
        %v941 = vpop.permute.xlu0 %940
        %942 = vrot.lane.b32.xlu0 %v607, 64
        %v943 = vpop.permute.xlu0 %942
        %944 = vrot.lane.b32.xlu0 %v609, 64
        %v945 = vpop.permute.xlu0 %944
        %946 = vrot.lane.b32.xlu0 %v763, 64
        %v947 = vpop.permute.xlu0 %946
        %948 = vrot.lane.b32.xlu0 %v765, 64
        %v949 = vpop.permute.xlu0 %948
        %950 = vrot.lane.b32.xlu0 %v919, 64
        %v951 = vpop.permute.xlu0 %950
        %952 = vrot.lane.b32.xlu0 %v921, 64
        %v953 = vpop.permute.xlu0 %952
        %vm970 = vcmask 64512
        %v971 = vsel %vm970, %v444, %v522
        %v972 = vsel %vm970, %v368, %v524
        %v973 = vsel %vm970, %v445, %v526
        %v974 = vsel %vm970, %v371, %v528
        %v975 = vsel %vm970, %v446, %v530
        %v976 = vsel %vm970, %v374, %v532
        %v977 = vsel %vm970, %v447, %v534
        %v978 = vsel %vm970, %v377, %v536
        %v979 = vsel %vm970, %v448, %v538
        %v980 = vsel %vm970, %v380, %v540
        %v981 = vsel %vm970, %v449, %v542
        %v982 = vsel %vm970, %v383, %v544
        %v983 = vsel %vm970, %v450, %v546
        %v984 = vsel %vm970, %v386, %v548
        %v985 = vsel %vm970, %v451, %v550
        %v986 = vsel %vm970, %v389, %v552
        %vm987 = vcmask 130048
        %v988 = vsel %vm987, %v971, %v611
        %v989 = vsel %vm987, %v972, %v613
        %v990 = vsel %vm987, %v973, %v615
        %v991 = vsel %vm987, %v974, %v617
        %v992 = vsel %vm987, %v975, %v619
        %v993 = vsel %vm987, %v976, %v621
        %v994 = vsel %vm987, %v977, %v623
        %v995 = vsel %vm987, %v978, %v625
        %v996 = vsel %vm987, %v979, %v627
        %v997 = vsel %vm987, %v980, %v629
        %v998 = vsel %vm987, %v981, %v631
        %v999 = vsel %vm987, %v982, %v633
        %v1000 = vsel %vm987, %v983, %v635
        %v1001 = vsel %vm987, %v984, %v637
        %v1002 = vsel %vm987, %v985, %v639
        %v1003 = vsel %vm987, %v986, %v641
        %vm1004 = vcmask 195584
        %v1005 = vsel %vm1004, %v988, %v660
        %v1006 = vsel %vm1004, %v989, %v662
        %v1007 = vsel %vm1004, %v990, %v664
        %v1008 = vsel %vm1004, %v991, %v666
        %v1009 = vsel %vm1004, %v992, %v668
        %v1010 = vsel %vm1004, %v993, %v670
        %v1011 = vsel %vm1004, %v994, %v672
        %v1012 = vsel %vm1004, %v995, %v674
        %v1013 = vsel %vm1004, %v996, %v676
        %v1014 = vsel %vm1004, %v997, %v678
        %v1015 = vsel %vm1004, %v998, %v680
        %v1016 = vsel %vm1004, %v999, %v682
        %v1017 = vsel %vm1004, %v1000, %v684
        %v1018 = vsel %vm1004, %v1001, %v686
        %v1019 = vsel %vm1004, %v1002, %v688
        %v1020 = vsel %vm1004, %v1003, %v690
        %vm1021 = vcmask 261120
        %v1022 = vsel %vm1021, %v1005, %v714
        %v1023 = vsel %vm1021, %v1006, %v716
        %v1024 = vsel %vm1021, %v1007, %v718
        %v1025 = vsel %vm1021, %v1008, %v720
        %v1026 = vsel %vm1021, %v1009, %v722
        %v1027 = vsel %vm1021, %v1010, %v724
        %v1028 = vsel %vm1021, %v1011, %v726
        %v1029 = vsel %vm1021, %v1012, %v728
        %v1030 = vsel %vm1021, %v1013, %v730
        %v1031 = vsel %vm1021, %v1014, %v732
        %v1032 = vsel %vm1021, %v1015, %v734
        %v1033 = vsel %vm1021, %v1016, %v736
        %v1034 = vsel %vm1021, %v1017, %v738
        %v1035 = vsel %vm1021, %v1018, %v740
        %v1036 = vsel %vm1021, %v1019, %v742
        %v1037 = vsel %vm1021, %v1020, %v744
        %vm1038 = vcmask 326656
        %v1039 = vsel %vm1038, %v1022, %v767
        %v1040 = vsel %vm1038, %v1023, %v769
        %v1041 = vsel %vm1038, %v1024, %v771
        %v1042 = vsel %vm1038, %v1025, %v773
        %v1043 = vsel %vm1038, %v1026, %v775
        %v1044 = vsel %vm1038, %v1027, %v777
        %v1045 = vsel %vm1038, %v1028, %v779
        %v1046 = vsel %vm1038, %v1029, %v781
        %v1047 = vsel %vm1038, %v1030, %v783
        %v1048 = vsel %vm1038, %v1031, %v785
        %v1049 = vsel %vm1038, %v1032, %v787
        %v1050 = vsel %vm1038, %v1033, %v789
        %v1051 = vsel %vm1038, %v1034, %v791
        %v1052 = vsel %vm1038, %v1035, %v793
        %v1053 = vsel %vm1038, %v1036, %v795
        %v1054 = vsel %vm1038, %v1037, %v797
        %vm1055 = vcmask 392192
        %v1056 = vsel %vm1055, %v1039, %v816
        %v1057 = vsel %vm1055, %v1040, %v818
        %v1058 = vsel %vm1055, %v1041, %v820
        %v1059 = vsel %vm1055, %v1042, %v822
        %v1060 = vsel %vm1055, %v1043, %v824
        %v1061 = vsel %vm1055, %v1044, %v826
        %v1062 = vsel %vm1055, %v1045, %v828
        %v1063 = vsel %vm1055, %v1046, %v830
        %v1064 = vsel %vm1055, %v1047, %v832
        %v1065 = vsel %vm1055, %v1048, %v834
        %v1066 = vsel %vm1055, %v1049, %v836
        %v1067 = vsel %vm1055, %v1050, %v838
        %v1068 = vsel %vm1055, %v1051, %v840
        %v1069 = vsel %vm1055, %v1052, %v842
        %v1070 = vsel %vm1055, %v1053, %v844
        %v1071 = vsel %vm1055, %v1054, %v846
        %vm1072 = vcmask 457728
        %v1073 = vsel %vm1072, %v1056, %v870
        %v1074 = vsel %vm1072, %v1057, %v872
        %v1075 = vsel %vm1072, %v1058, %v874
        %v1076 = vsel %vm1072, %v1059, %v876
        %v1077 = vsel %vm1072, %v1060, %v878
        %v1078 = vsel %vm1072, %v1061, %v880
        %v1079 = vsel %vm1072, %v1062, %v882
        %v1080 = vsel %vm1072, %v1063, %v884
        %v1081 = vsel %vm1072, %v1064, %v886
        %v1082 = vsel %vm1072, %v1065, %v888
        %v1083 = vsel %vm1072, %v1066, %v890
        %v1084 = vsel %vm1072, %v1067, %v892
        %v1085 = vsel %vm1072, %v1068, %v894
        %v1086 = vsel %vm1072, %v1069, %v896
        %v1087 = vsel %vm1072, %v1070, %v898
        %v1088 = vsel %vm1072, %v1071, %v900
        %vm1089 = vcmask 523264
        %v1090 = vsel %vm1089, %v1073, %v923
        %v1091 = vsel %vm1089, %v1074, %v925
        %v1092 = vsel %vm1089, %v1075, %v927
        %v1093 = vsel %vm1089, %v1076, %v929
        %v1094 = vsel %vm1089, %v1077, %v931
        %v1095 = vsel %vm1089, %v1078, %v933
        %v1096 = vsel %vm1089, %v1079, %v935
        %v1097 = vsel %vm1089, %v1080, %v937
        %v1098 = vsel %vm1089, %v1081, %v939
        %v1099 = vsel %vm1089, %v1082, %v941
        %v1100 = vsel %vm1089, %v1083, %v943
        %v1101 = vsel %vm1089, %v1084, %v945
        %v1102 = vsel %vm1089, %v1085, %v947
        %v1103 = vsel %vm1089, %v1086, %v949
        %v1104 = vsel %vm1089, %v1087, %v951
        %v1105 = vsel %vm1089, %v1088, %v953
        %v1106 = vld [vmem:[%s299] sm:$0xff]
        %v1107 = vld [vmem:[%s299 + $0x8] sm:$0xff]
        %v1108 = vld [vmem:[%s299 + $0x10] sm:$0xff]
        %v1109 = vld [vmem:[%s299 + $0x18] sm:$0xff]
        %v1110 = vld [vmem:[%s299 + $0x20] sm:$0xff]
        %v1111 = vld [vmem:[%s299 + $0x28] sm:$0xff]
        %v1112 = vld [vmem:[%s299 + $0x30] sm:$0xff]
        %v1113 = vld [vmem:[%s299 + $0x38] sm:$0xff]
        %v1114 = vld [vmem:[%s299 + $0x40] sm:$0xff]
        %v1115 = vld [vmem:[%s302] sm:$0x1]
        %v1117 = vlaneseq
        %v1118 = vshrl.u32 %v1117, 7
        %v1119 = vsub.s32 0, %v1118
        %v1120 = vrot.slane %v1115, %v1119
        %vm1122 = vcmask 588800
        %v1124 = vsel %vm1122, %v1090, 0
        %v1127 = vsel %vm1122, %v1091, 0
        %v1130 = vsel %vm1122, %v1092, 0
        %v1133 = vsel %vm1122, %v1093, 0
        %v1136 = vsel %vm1122, %v1094, 0
        %v1139 = vsel %vm1122, %v1095, 0
        %v1142 = vsel %vm1122, %v1096, 0
        %v1145 = vsel %vm1122, %v1097, 0
        %v1148 = vsel %vm1122, %v1098, 0
        %v1151 = vsel %vm1122, %v1099, 0
        %v1154 = vsel %vm1122, %v1100, 0
        %v1157 = vsel %vm1122, %v1101, 0
        %v1160 = vsel %vm1122, %v1102, 0
        %v1163 = vsel %vm1122, %v1103, 0
        %v1166 = vsel %vm1122, %v1104, 0
        %v1169 = vsel %vm1122, %v1105, 0
        %1171 = vmatprep.subr.mxu0 0.0
        %1172 = vmatpush1.msra.mxu0 %v1106
        %1173 = vmatprep.subr.mxu0 0.0
        %1174 = vmatpush1.msra.mxu0 %v1107
        %1175 = vmatprep.subr.mxu0 0.0
        %1176 = vmatpush1.msra.mxu0 %v1108
        %1177 = vmatprep.subr.mxu0 0.0
        %1178 = vmatpush1.msra.mxu0 %v1109
        %1179 = vmatprep.subr.mxu0 0.0
        %1180 = vmatpush1.msra.mxu0 %v1110
        %1181 = vmatprep.subr.mxu0 0.0
        %1182 = vmatpush1.msra.mxu0 %v1111
        %1183 = vmatprep.subr.mxu0 0.0
        %1184 = vmatpush1.msra.mxu0 %v1112
        %1185 = vmatprep.subr.mxu0 0.0
        %1186 = vmatpush1.msra.mxu0 %v1113
        %1187 = vmatprep.subr.mxu0 0.0
        %1188 = vmatpush1.msra.mxu0 %v1114
        %1189 = vmatprep.subr.mxu0 0.0
        %1190 = vmatpush1.msra.mxu0 0.0
        %1191 = vmatprep.subr.mxu0 0.0
        %1192 = vmatpush1.msra.mxu0 0.0
        %1193 = vmatprep.subr.mxu0 0.0
        %1194 = vmatpush1.msra.mxu0 0.0
        %1195 = vmatprep.subr.mxu0 0.0
        %1196 = vmatpush1.msra.mxu0 0.0
        %1197 = vmatprep.subr.mxu0 0.0
        %1198 = vmatpush1.msra.mxu0 0.0
        %1199 = vmatprep.subr.mxu0 0.0
        %1200 = vmatpush1.msra.mxu0 0.0
        %1201 = vmatprep.subr.mxu0 0.0
        %1202 = vmatpush1.msra.mxu0 0.0
        %1203 = vmatprep.subr.mxu0 0.0
        %1204 = vmatpush1.msra.mxu0 0.0
        %1205 = vmatprep.subr.mxu0 0.0
        %1206 = vmatpush1.msra.mxu0 0.0
        %1207 = vmatprep.subr.mxu0 0.0
        %1208 = vmatpush1.msra.mxu0 0.0
        %1209 = vmatprep.subr.mxu0 0.0
        %1210 = vmatpush1.msra.mxu0 0.0
        %1211 = vmatprep.subr.mxu0 0.0
        %1212 = vmatpush1.msra.mxu0 0.0
        %1213 = vmatprep.subr.mxu0 0.0
        %1214 = vmatpush1.msra.mxu0 0.0
        %1215 = vmatprep.subr.mxu0 0.0
        %1216 = vmatpush1.msra.mxu0 0.0
        %1217 = vmatprep.subr.mxu0 0.0
        %1218 = vmatpush1.msra.mxu0 0.0
        %1219 = vmatprep.subr.mxu0 0.0
        %1220 = vmatpush1.msra.mxu0 0.0
        %1221 = vmatprep.subr.mxu0 0.0
        %1222 = vmatpush1.msra.mxu0 0.0
        %1223 = vmatprep.subr.mxu0 0.0
        %1224 = vmatpush1.msra.mxu0 0.0
        %1225 = vmatprep.subr.mxu0 0.0
        %1226 = vmatpush1.msra.mxu0 0.0
        %1227 = vmatprep.subr.mxu0 0.0
        %1228 = vmatpush1.msra.mxu0 0.0
        %1229 = vmatprep.subr.mxu0 0.0
        %1230 = vmatpush1.msra.mxu0 0.0
        %1231 = vmatprep.subr.mxu0 0.0
        %1232 = vmatpush1.msra.mxu0 0.0
        %1233 = vmatprep.subr.mxu0 0.0
        %1234 = vmatpush1.msra.mxu0 0.0
        %1235 = vmatprep.mubr.f32.mxu0 0.0
        %1236 = vmatmul.mubr.f32.gmra.mrb[0].mxu0 %v1124
        %v1237 = vpop.f32.mrb[0].mxu0
        %v1238 = vadd.f32 %v1120, %v1237
        %v1239 = vpop.f32.mrb[0].mxu0
        %1240 = vmatprep.mubr.f32.mxu0 0.0
        %1241 = vmatmul.mubr.f32.gmra.mrb[0].mxu0 %v1127
        %v1242 = vpop.f32.mrb[0].mxu0
        %v1243 = vadd.f32 %v1120, %v1242
        %v1244 = vpop.f32.mrb[0].mxu0
        %1245 = vmatprep.mubr.f32.mxu0 0.0
        %1246 = vmatmul.mubr.f32.gmra.mrb[0].mxu0 %v1130
        %v1247 = vpop.f32.mrb[0].mxu0
        %v1248 = vadd.f32 %v1120, %v1247
        %v1249 = vpop.f32.mrb[0].mxu0
        %1250 = vmatprep.mubr.f32.mxu0 0.0
        %1251 = vmatmul.mubr.f32.gmra.mrb[0].mxu0 %v1133
        %v1252 = vpop.f32.mrb[0].mxu0
        %v1253 = vadd.f32 %v1120, %v1252
        %v1254 = vpop.f32.mrb[0].mxu0
        %1255 = vmatprep.mubr.f32.mxu0 0.0
        %1256 = vmatmul.mubr.f32.gmra.mrb[0].mxu0 %v1136
        %v1257 = vpop.f32.mrb[0].mxu0
        %v1258 = vadd.f32 %v1120, %v1257
        %v1259 = vpop.f32.mrb[0].mxu0
        %1260 = vmatprep.mubr.f32.mxu0 0.0
        %1261 = vmatmul.mubr.f32.gmra.mrb[0].mxu0 %v1139
        %v1262 = vpop.f32.mrb[0].mxu0
        %v1263 = vadd.f32 %v1120, %v1262
        %v1264 = vpop.f32.mrb[0].mxu0
        %1265 = vmatprep.mubr.f32.mxu0 0.0
        %1266 = vmatmul.mubr.f32.gmra.mrb[0].mxu0 %v1142
        %v1267 = vpop.f32.mrb[0].mxu0
        %v1268 = vadd.f32 %v1120, %v1267
        %v1269 = vpop.f32.mrb[0].mxu0
        %1270 = vmatprep.mubr.f32.mxu0 0.0
        %1271 = vmatmul.mubr.f32.gmra.mrb[0].mxu0 %v1145
        %v1272 = vpop.f32.mrb[0].mxu0
        %v1273 = vadd.f32 %v1120, %v1272
        %v1274 = vpop.f32.mrb[0].mxu0
        %1275 = vmatprep.mubr.f32.mxu0 0.0
        %1276 = vmatmul.mubr.f32.gmra.mrb[0].mxu0 %v1148
        %v1277 = vpop.f32.mrb[0].mxu0
        %v1278 = vadd.f32 %v1120, %v1277
        %v1279 = vpop.f32.mrb[0].mxu0
        %1280 = vmatprep.mubr.f32.mxu0 0.0
        %1281 = vmatmul.mubr.f32.gmra.mrb[0].mxu0 %v1151
        %v1282 = vpop.f32.mrb[0].mxu0
        %v1283 = vadd.f32 %v1120, %v1282
        %v1284 = vpop.f32.mrb[0].mxu0
        %1285 = vmatprep.mubr.f32.mxu0 0.0
        %1286 = vmatmul.mubr.f32.gmra.mrb[0].mxu0 %v1154
        %v1287 = vpop.f32.mrb[0].mxu0
        %v1288 = vadd.f32 %v1120, %v1287
        %v1289 = vpop.f32.mrb[0].mxu0
        %1290 = vmatprep.mubr.f32.mxu0 0.0
        %1291 = vmatmul.mubr.f32.gmra.mrb[0].mxu0 %v1157
        %v1292 = vpop.f32.mrb[0].mxu0
        %v1293 = vadd.f32 %v1120, %v1292
        %v1294 = vpop.f32.mrb[0].mxu0
        %1295 = vmatprep.mubr.f32.mxu0 0.0
        %1296 = vmatmul.mubr.f32.gmra.mrb[0].mxu0 %v1160
        %v1297 = vpop.f32.mrb[0].mxu0
        %v1298 = vadd.f32 %v1120, %v1297
        %v1299 = vpop.f32.mrb[0].mxu0
        %1300 = vmatprep.mubr.f32.mxu0 0.0
        %1301 = vmatmul.mubr.f32.gmra.mrb[0].mxu0 %v1163
        %v1302 = vpop.f32.mrb[0].mxu0
        %v1303 = vadd.f32 %v1120, %v1302
        %v1304 = vpop.f32.mrb[0].mxu0
        %1305 = vmatprep.mubr.f32.mxu0 0.0
        %1306 = vmatmul.mubr.f32.gmra.mrb[0].mxu0 %v1166
        %v1307 = vpop.f32.mrb[0].mxu0
        %v1308 = vadd.f32 %v1120, %v1307
        %v1309 = vpop.f32.mrb[0].mxu0
        %1310 = vmatprep.mubr.f32.mxu0 0.0
        %1311 = vmatmul.mubr.f32.gmra.mrb[0].mxu0 %v1169
        %v1312 = vpop.f32.mrb[0].mxu0
        %v1313 = vadd.f32 %v1120, %v1312
        %v1314 = vpop.f32.mrb[0].mxu0
        %1315 = vdwg.mxu0
        %v1316 = vmax.f32 %v1238, 0.0
        %v1317 = vmax.f32 %v1243, 0.0
        %v1318 = vmax.f32 %v1248, 0.0
        %v1319 = vmax.f32 %v1253, 0.0
        %v1320 = vmax.f32 %v1258, 0.0
        %v1321 = vmax.f32 %v1263, 0.0
        %v1322 = vmax.f32 %v1268, 0.0
        %v1323 = vmax.f32 %v1273, 0.0
        %v1324 = vmax.f32 %v1278, 0.0
        %v1325 = vmax.f32 %v1283, 0.0
        %v1326 = vmax.f32 %v1288, 0.0
        %v1327 = vmax.f32 %v1293, 0.0
        %v1328 = vmax.f32 %v1298, 0.0
        %v1329 = vmax.f32 %v1303, 0.0
        %v1330 = vmax.f32 %v1308, 0.0
        %v1331 = vmax.f32 %v1313, 0.0
        %1332 = vst [vmem:[%s275] sm:$0xff] %v1316
        %1333 = vst [vmem:[%s275 + $0x8] sm:$0xff] %v1317
        %1334 = vst [vmem:[%s275 + $0x10] sm:$0xff] %v1318
        %1335 = vst [vmem:[%s275 + $0x18] sm:$0xff] %v1319
        %1336 = vst [vmem:[%s275 + $0x20] sm:$0xff] %v1320
        %1337 = vst [vmem:[%s275 + $0x28] sm:$0xff] %v1321
        %1338 = vst [vmem:[%s275 + $0x30] sm:$0xff] %v1322
        %1339 = vst [vmem:[%s275 + $0x38] sm:$0xff] %v1323
        %1340 = vst [vmem:[%s275 + $0x40] sm:$0xff] %v1324
        %1341 = vst [vmem:[%s275 + $0x48] sm:$0xff] %v1325
        %1342 = vst [vmem:[%s275 + $0x50] sm:$0xff] %v1326
        %1343 = vst [vmem:[%s275 + $0x58] sm:$0xff] %v1327
        %1344 = vst [vmem:[%s275 + $0x60] sm:$0xff] %v1328
        %1345 = vst [vmem:[%s275 + $0x68] sm:$0xff] %v1329
        %1346 = vst [vmem:[%s275 + $0x70] sm:$0xff] %v1330
        %1347 = vst [vmem:[%s275 + $0x78] sm:$0xff] %v1331
        %s1348 = sand.u32 %s157, 1
        %s1349 = scalar_lea.sflag [#allocation3], %s1348
        %s1350 = sand.u32 %s157, 1
        %s1351 = smul.addr %s1350, 128
        %s1352 = scalar_lea.vmem [#allocation2], %s1351
        // Predicated region
        $region37: #{tpu_custom_call.1} parent=35 // pred_check
          %p1353 = pneg %p167
        $region38: #{tpu_custom_call.1} parent=35 // pred_check_branch
          %1355 = sbr.rel (%p1353) target = $region40
        $region39: #{tpu_custom_call.1} parent=35 // pred_region
          %s1356 = smul.u32 8, %s25
          %s1358 = ssub.s32 2048, 2048
          %1359 = vsyncadd %s1349, %s1358
          %s1360 = smul.addr %s1356, 2
          %s1361 = sadd.s32 %s23, %s1360
          %s1362 = smul.addr %s24, 32
          %s1363 = sadd.s32 %s1361, %s1362
          %s1364 = smul.addr %s1363, 128
          %s1365 = scalar_lea.hbm %s4, %s1364
          %s1366 = sshll.u32 %s1352, 4
          %s1367 = int_to_ptr.vmem [resolvable:$true] %s1366
          %1372 = dma.vmem_to_hbm [thread:$0]  %s1367, 2048, %s1365, %s1349, 128, 128, 8
        $region40: #{tpu_custom_call.1} parent=35 // pred_fallthru
          _
      $region36: #{tpu_custom_call.1} parent=5 // pred_fallthru
        _
      %p1373 = scmp.le.s32.totalorder 2, %s13
      // Predicated region
      $region41: #{tpu_custom_call.1} parent=5 // pred_check
        %p1374 = pneg %p1373
      $region42: #{tpu_custom_call.1} parent=5 // pred_check_branch
        %1376 = sbr.rel (%p1374) target = $region44
      $region43: #{tpu_custom_call.1} parent=5 // pred_region
        %s1377 = ssub.s32 %s13, 2
        // Predicated region
        $region45: #{tpu_custom_call.1} parent=43 // pred_check
          %p1378 = pneg %p173
        $region46: #{tpu_custom_call.1} parent=43 // pred_check_branch
          %1380 = sbr.rel (%p1378) target = $region48
        $region47: #{tpu_custom_call.1} parent=43 // pred_region
          %s1381 = sand.u32 %s158, 1
          %s1382 = scalar_lea.sflag [#allocation3], %s1381
          %s1383 = sand.u32 %s158, 1
          %s1384 = smul.addr %s1383, 128
          %s1385 = scalar_lea.vmem [#allocation2], %s1384
          %1386 = dma.done %s1382, 2048
        $region48: #{tpu_custom_call.1} parent=43 // pred_fallthru
          _
      $region44: #{tpu_custom_call.1} parent=5 // pred_fallthru
        _
    $region6: #{tpu_custom_call.1} parent=1 // loop_footer
      %s17 = sadd.s32 1, %s13
    $region7: #{tpu_custom_call.1} parent=1 // loop_footer_branch
      %12 = sbr.rel target = $region3
    $region8: #{tpu_custom_call.1} parent=1 // loop_exit
      _
    %1387 = vsyncpa [#allocation3], 1
    %s1388 = scalar_lea.sflag [#allocation3], 1
    %1389 = vsyncpa %s1388, 1

</llo_original>
